<compile_context>
chip_gen: v7x
topology: tpu7x:2x2x1
jax: 0.10.0
libtpu: 0.0.40
codegen_flags: <defaults>
</compile_context>

<pallas_src>
import numpy as np
import jax
import jax.numpy as jnp
from jax.experimental import pallas as pl
from jax.experimental.pallas import tpu as pltpu


def round_up(n, m):
    return ((n + m - 1) // m) * m


# ----------------------------- Pallas kernel -------------------------------

def make_maf_kernel(D, H1x2, H2x2, offs, out_cols):
    """Kernel over one batch tile: fused 3-layer masked MLP + normalization."""

    def kernel(x_ref, p_ref, out_ref):
        x = x_ref[...]                                          # (tb, D)

        # Static slices into the packed parameter slab (all offsets are
        # Python ints, sublane-aligned to 8 rows).
        w1 = p_ref[offs["w1"]:offs["w1"] + D, :H1x2]            # (D, 2H1)
        b1 = p_ref[offs["b1"]:offs["b1"] + 1, :H1x2]            # (1, 2H1)
        w2 = p_ref[offs["w2"]:offs["w2"] + H1x2, :H2x2]         # (2H1, 2H2)
        b2 = p_ref[offs["b2"]:offs["b2"] + 1, :H2x2]            # (1, 2H2)
        w3 = p_ref[offs["w3"]:offs["w3"] + H2x2, :2 * D]        # (2H2, 2D)
        b3 = p_ref[offs["b3"]:offs["b3"] + 1, :2 * D]           # (1, 2D)

        # Fused mean/scale MADE: 3 MXU matmuls + 3 bias adds + 2 ReLUs.
        h = jnp.maximum(
            jnp.dot(x, w1, preferred_element_type=jnp.float32) + b1, 0.0)
        h = jnp.maximum(
            jnp.dot(h, w2, preferred_element_type=jnp.float32) + b2, 0.0)
        y = jnp.dot(h, w3, preferred_element_type=jnp.float32) + b3

        m = y[:, :D]
        log_s = y[:, D:2 * D]
        # Keep the PyTorch division form: u = (x - m) / exp(log_s).
        u = (x - m) / jnp.exp(log_s)

        # Single lane-dense store: [u | m | log_s | zero-pad] -> (tb, out_cols).
        out = jnp.concatenate([u, m, log_s], axis=1)
        pad = out_cols - 3 * D
        if pad > 0:
            out = jnp.concatenate(
                [out, jnp.zeros((out.shape[0], pad), out.dtype)], axis=1)
        out_ref[...] = out.astype(out_ref.dtype)

    return kernel


# ------------------------ parameter setup (glue) ----------------------------

def made_masks(input_dim, hidden_dims, order):
    """Standard MADE connectivity masks (out, in) per layer."""
    if input_dim < 2:
        raise ValueError("MADE requires input_dim >= 2")
    degrees = [np.asarray(order, dtype=np.int64)]
    for h in hidden_dims:
        degrees.append(np.arange(h) % (input_dim - 1) + 1)
    masks = []
    for d_in, d_out in zip(degrees[:-1], degrees[1:]):
        masks.append((d_out[:, None] >= d_in[None, :]).astype(np.float32))
    # Output layer uses strict inequality (autoregressive property).
    masks.append((degrees[0][:, None] > degrees[-1][None, :]).astype(np.float32))
    return masks


def make_made_params(key, input_dim, hidden_dims, order):
    """Deterministic weights; returns list of (W_masked.T, b): (in,out), (1,out)."""
    dims = [input_dim] + list(hidden_dims) + [input_dim]
    masks = made_masks(input_dim, hidden_dims, order)
    keys = jax.random.split(key, 2 * (len(dims) - 1))
    params = []
    for li, (din, dout, mask) in enumerate(zip(dims[:-1], dims[1:], masks)):
        w = jax.random.normal(keys[2 * li], (dout, din), jnp.float32) / np.sqrt(din)
        b = 0.01 * jax.random.normal(keys[2 * li + 1], (dout,), jnp.float32)
        wm_t = (w * jnp.asarray(mask)).T            # (din, dout), already masked
        params.append((wm_t, b.reshape(1, dout)))
    return params


def fuse_and_pack_params(mean_params, scale_params):
    """Fuse the two 3-layer MADEs into one network; pack into a single f32 slab.

    Returns (slab, offsets, dims). Sections are sublane-aligned (8-row) so the
    in-kernel static slices are cheap aligned loads.
    """
    (wm1, bm1), (wm2, bm2), (wm3, bm3) = mean_params
    (ws1, bs1), (ws2, bs2), (ws3, bs3) = scale_params
    D, H1 = wm1.shape
    H2 = wm2.shape[1]

    w1 = jnp.concatenate([wm1, ws1], axis=1)                     # (D, 2H1)
    b1 = jnp.concatenate([bm1, bs1], axis=1)                     # (1, 2H1)
    z12 = jnp.zeros((H1, H2), jnp.float32)
    w2 = jnp.block([[wm2, z12], [z12, ws2]])                     # (2H1, 2H2)
    b2 = jnp.concatenate([bm2, bs2], axis=1)                     # (1, 2H2)
    z23 = jnp.zeros((H2, D), jnp.float32)
    w3 = jnp.block([[wm3, z23], [z23, ws3]])                     # (2H2, 2D)
    b3 = jnp.concatenate([bm3, bs3], axis=1)                     # (1, 2D)

    cols = max(2 * H1, 2 * H2, 2 * D)
    pieces = [("w1", w1), ("b1", b1), ("w2", w2),
              ("b2", b2), ("w3", w3), ("b3", b3)]
    offsets = {}
    blocks = []
    row = 0
    for name, p in pieces:
        offsets[name] = row
        pr, pc = p.shape
        padded = jnp.pad(p, ((0, round_up(pr, 8) - pr), (0, cols - pc)))
        blocks.append(padded)
        row += padded.shape[0]
    slab = jnp.concatenate(blocks, axis=0)                       # (rows, cols)
    dims = dict(D=D, H1x2=2 * H1, H2x2=2 * H2, cols=cols)
    return slab, offsets, dims


# ------------------------------- wrapper ------------------------------------

def maf_block_forward(x, slab, offsets, dims, *, block_batch=512):
    """Returns (u, m, log_s), each (B, D)."""
    B, D = x.shape
    assert D == dims["D"]
    out_cols = round_up(max(3 * D, 128), 128)
    kernel = make_maf_kernel(D, dims["H1x2"], dims["H2x2"], offsets, out_cols)
    out_shape = jax.ShapeDtypeStruct((B, out_cols), x.dtype)

    if B <= block_batch or B % block_batch != 0:
        # Small / irregular batch: single invocation, no grid loop wrapper.
        out = pl.pallas_call(kernel, out_shape=out_shape)(x, slab)
    else:
        tb = block_batch
        out = pl.pallas_call(
            kernel,
            out_shape=out_shape,
            grid=(B // tb,),
            in_specs=[pl.BlockSpec((tb, D), lambda i: (i, 0)),
                      pl.BlockSpec(slab.shape, lambda i: (0, 0))],
            out_specs=pl.BlockSpec((tb, out_cols), lambda i: (i, 0)),
            compiler_params=pltpu.CompilerParams(
                dimension_semantics=("parallel",)),
        )(x, slab)

    u = out[:, :D]
    m = out[:, D:2 * D]
    log_s = out[:, 2 * D:3 * D]
    return u, m, log_s


# ------------------------------ reference -----------------------------------

def made_ref(x, params):
    h = x
    n = len(params)
    for i, (w, b) in enumerate(params):
        h = h @ w + b
        if i < n - 1:
            h = jnp.maximum(h, 0.0)
    return h


def maf_ref(x, mean_params, scale_params):
    m = made_ref(x, mean_params)
    log_s = made_ref(x, scale_params)
    u = (x - m) / jnp.exp(log_s)
    return u, m, log_s


# --------------------------------- main --------------------------------------

if __name__ == "__main__":
    # TODO(synk): MAFBlock.inverse (per-dimension sequential loop) is not
    # implemented; only the forward pass is required here.
    input_dim = 8
    hidden_dims = (32, 32)
    reverse = True
    order = np.arange(input_dim, 0, -1) if reverse else np.arange(1, input_dim + 1)

    root = jax.random.PRNGKey(0)
    k_x, k_x2, k_mean, k_scale = jax.random.split(root, 4)

    mean_params = make_made_params(k_mean, input_dim, hidden_dims, order)
    scale_params = make_made_params(k_scale, input_dim, hidden_dims, order)
    slab, offsets, dims = fuse_and_pack_params(mean_params, scale_params)

    # --- Small batch: gridless single-shot path -----------------------------
    x = jax.random.normal(k_x, (8, input_dim), jnp.float32)
    u, m, log_s = maf_block_forward(x, slab, offsets, dims)
    jax.block_until_ready((u, m, log_s))

    u_r, m_r, ls_r = maf_ref(x, mean_params, scale_params)
    np.testing.assert_allclose(np.asarray(m), np.asarray(m_r), rtol=1e-4, atol=1e-5)
    np.testing.assert_allclose(np.asarray(log_s), np.asarray(ls_r), rtol=1e-4, atol=1e-5)
    np.testing.assert_allclose(np.asarray(u), np.asarray(u_r), rtol=1e-4, atol=1e-5)

    # --- Larger batch: batch-tiled grid, 'parallel' (uses both v7x TCs) -----
    xb = jax.random.normal(k_x2, (1024, input_dim), jnp.float32)
    ub, mb, lsb = maf_block_forward(xb, slab, offsets, dims, block_batch=512)
    jax.block_until_ready((ub, mb, lsb))

    ub_r, mb_r, lsb_r = maf_ref(xb, mean_params, scale_params)
    np.testing.assert_allclose(np.asarray(mb), np.asarray(mb_r), rtol=1e-4, atol=1e-5)
    np.testing.assert_allclose(np.asarray(lsb), np.asarray(lsb_r), rtol=1e-4, atol=1e-5)
    np.testing.assert_allclose(np.asarray(ub), np.asarray(ub_r), rtol=1e-4, atol=1e-5)

    print("KERNEL_OK")
</pallas_src>

<mosaic_0001>
module attributes {stable_mosaic.version = 11 : i64} {
  func.func @kernel(%arg0: memref<8x8xf32, #tpu.memory_space<vmem>>, %arg1: memref<160x64xf32, #tpu.memory_space<vmem>>, %arg2: memref<8x128xf32, #tpu.memory_space<vmem>>) attributes {dimension_semantics = [], scalar_prefetch = 0 : i64, scratch_operands = 0 : i64, tpu.core_type = #tpu.core_type<tc>} {
    %c0 = arith.constant 0 : index
    %c0_0 = arith.constant 0 : index
    %0 = vector.load %arg0[%c0, %c0_0] : memref<8x8xf32, #tpu.memory_space<vmem>>, vector<8x8xf32>
    %c0_1 = arith.constant 0 : index
    %c0_2 = arith.constant 0 : index
    %1 = vector.load %arg1[%c0_1, %c0_2] : memref<160x64xf32, #tpu.memory_space<vmem>>, vector<8x64xf32>
    %c8 = arith.constant 8 : index
    %c0_3 = arith.constant 0 : index
    %2 = vector.load %arg1[%c8, %c0_3] : memref<160x64xf32, #tpu.memory_space<vmem>>, vector<1x64xf32>
    %c16 = arith.constant 16 : index
    %c0_4 = arith.constant 0 : index
    %3 = vector.load %arg1[%c16, %c0_4] : memref<160x64xf32, #tpu.memory_space<vmem>>, vector<64x64xf32>
    %c80 = arith.constant 80 : index
    %c0_5 = arith.constant 0 : index
    %4 = vector.load %arg1[%c80, %c0_5] : memref<160x64xf32, #tpu.memory_space<vmem>>, vector<1x64xf32>
    %c88 = arith.constant 88 : index
    %c0_6 = arith.constant 0 : index
    %5 = vector.load %arg1[%c88, %c0_6] : memref<160x64xf32, #tpu.memory_space<vmem>>, vector<64x16xf32>
    %c152 = arith.constant 152 : index
    %c0_7 = arith.constant 0 : index
    %6 = vector.load %arg1[%c152, %c0_7] : memref<160x64xf32, #tpu.memory_space<vmem>>, vector<1x16xf32>
    %cst = arith.constant dense<0.000000e+00> : vector<8x64xf32>
    %7 = tpu.matmul %0, %1, %cst {dimension_numbers = #tpu.dot_dimension_numbers<[1], [0], [0], [1], [0, 0, 1, 1], [], []>} : vector<8x8xf32>, vector<8x64xf32>, vector<8x64xf32> -> vector<8x64xf32>
    %8 = vector.broadcast %2 : vector<1x64xf32> to vector<8x64xf32>
    %9 = arith.addf %7, %8 : vector<8x64xf32>
    %cst_8 = arith.constant 0.000000e+00 : f32
    %10 = vector.broadcast %cst_8 : f32 to vector<8x64xf32>
    %11 = arith.maximumf %9, %10 : vector<8x64xf32>
    %cst_9 = arith.constant dense<0.000000e+00> : vector<8x64xf32>
    %12 = tpu.matmul %11, %3, %cst_9 {dimension_numbers = #tpu.dot_dimension_numbers<[1], [0], [0], [1], [0, 0, 1, 1], [], []>} : vector<8x64xf32>, vector<64x64xf32>, vector<8x64xf32> -> vector<8x64xf32>
    %13 = vector.broadcast %4 : vector<1x64xf32> to vector<8x64xf32>
    %14 = arith.addf %12, %13 : vector<8x64xf32>
    %cst_10 = arith.constant 0.000000e+00 : f32
    %15 = vector.broadcast %cst_10 : f32 to vector<8x64xf32>
    %16 = arith.maximumf %14, %15 : vector<8x64xf32>
    %cst_11 = arith.constant dense<0.000000e+00> : vector<8x16xf32>
    %17 = tpu.matmul %16, %5, %cst_11 {dimension_numbers = #tpu.dot_dimension_numbers<[1], [0], [0], [1], [0, 0, 1, 1], [], []>} : vector<8x64xf32>, vector<64x16xf32>, vector<8x16xf32> -> vector<8x16xf32>
    %18 = vector.broadcast %6 : vector<1x16xf32> to vector<8x16xf32>
    %19 = arith.addf %17, %18 : vector<8x16xf32>
    %20 = vector.extract_strided_slice %19 {offsets = [0, 0], sizes = [8, 8], strides = [1, 1]} : vector<8x16xf32> to vector<8x8xf32>
    %21 = vector.extract_strided_slice %19 {offsets = [0, 8], sizes = [8, 8], strides = [1, 1]} : vector<8x16xf32> to vector<8x8xf32>
    %22 = arith.subf %0, %20 : vector<8x8xf32>
    %23 = math.exp %21 : vector<8x8xf32>
    %24 = arith.divf %22, %23 : vector<8x8xf32>
    %25 = tpu.concatenate %24, %20, %21 in 1 : vector<8x8xf32>, vector<8x8xf32>, vector<8x8xf32> -> vector<8x24xf32>
    %cst_12 = arith.constant 0.000000e+00 : f32
    %26 = vector.broadcast %cst_12 : f32 to vector<8x104xf32>
    %27 = tpu.concatenate %25, %26 in 1 : vector<8x24xf32>, vector<8x104xf32> -> vector<8x128xf32>
    %c0_13 = arith.constant 0 : index
    %c0_14 = arith.constant 0 : index
    %28 = vector.load %arg2[%c0_13, %c0_14] : memref<8x128xf32, #tpu.memory_space<vmem>>, vector<8x128xf32>
    tpu.vector_store %arg2[%c0_13, %c0_14], %27 {strides = array<i32>} : memref<8x128xf32, #tpu.memory_space<vmem>>, vector<8x128xf32>,
    return
  }
}

</mosaic_0001>

<llo_original>
// kernel: tpu_custom_call.1
$region0: #{tpu_custom_call.1}
  #allocation0 [shape = 'u32[]', space=smem, size = 0x4, offset = 0x4, fixed_abs, tag = 'smem constant byte address 0x4 - core index']
  #allocation1 [shape = 'u32[144,128]{1,0:T(1,128)}', space=vmem, size = 0x12000, scoped, tag = 'internal scratch']
  %s0 = inlined_call_operand.vmem [shape: f32[8,8], index: 0, kind: input, shape index: {}]
  %s1 = inlined_call_operand.vmem [shape: f32[160,64], index: 1, kind: input, shape index: {}]
  %s2 = inlined_call_operand.hbm [shape: f32[8,128], index: 2, kind: output, shape index: {}]
  %s3 = sld [smem:[#allocation0]]
  $region18: #{tpu_custom_call.1} parent=0
    _
  %s5 = ssub.s32 1, %s3
  %s6 = scalar_select 0, %s5, %s3
  $region1: #{tpu_custom_call.1} parent=0
    #allocation2 [shape = 'u8[4096]{0}', space=vmem, size = 0x1000, scoped, tag = 'output window, operand 0, single buffered']
    #allocation3 [shape = 's32[1]{0}', space=sflag, size = 0x4, scoped, tag = 'scoped memory for tpu_custom_call.1']
    %7 = vsyncpa [#allocation3], 0
    // Predicated region
    $region2: #{tpu_custom_call.1} parent=1 // pred_check
      _
    $region3: #{tpu_custom_call.1} parent=1 // pred_check_branch
      %9 = sbr.rel (0) target = $region5
    $region4: #{tpu_custom_call.1} parent=1 // pred_region
      _
    $region5: #{tpu_custom_call.1} parent=1 // pred_fallthru
      _
    // Predicated region
    $region6: #{tpu_custom_call.1} parent=1 // pred_check
      _
    $region7: #{tpu_custom_call.1} parent=1 // pred_check_branch
      %11 = sbr.rel (0) target = $region9
    $region8: #{tpu_custom_call.1} parent=1 // pred_region
      _
    $region9: #{tpu_custom_call.1} parent=1 // pred_fallthru
      _
    %v12 = vld [vmem:[%s0] sm:$0xff]
    %v13 = vld [vmem:[%s1] sm:$0xff]
    %v14 = vld [vmem:[%s1 + $0x8] sm:$0x1]
    %v15 = vld [vmem:[%s1 + $0x10] sm:$0xff]
    %v16 = vld [vmem:[%s1 + $0x18] sm:$0xff]
    %v17 = vld [vmem:[%s1 + $0x20] sm:$0xff]
    %v18 = vld [vmem:[%s1 + $0x28] sm:$0xff]
    %v19 = vld [vmem:[%s1 + $0x30] sm:$0xff]
    %v20 = vld [vmem:[%s1 + $0x38] sm:$0xff]
    %v21 = vld [vmem:[%s1 + $0x40] sm:$0xff]
    %v22 = vld [vmem:[%s1 + $0x48] sm:$0xff]
    %v23 = vld [vmem:[%s1 + $0x50] sm:$0x1]
    %v24 = vld [vmem:[%s1 + $0x58] sm:$0xff]
    %v25 = vld [vmem:[%s1 + $0x60] sm:$0xff]
    %v26 = vld [vmem:[%s1 + $0x68] sm:$0xff]
    %v27 = vld [vmem:[%s1 + $0x70] sm:$0xff]
    %v28 = vld [vmem:[%s1 + $0x78] sm:$0xff]
    %v29 = vld [vmem:[%s1 + $0x80] sm:$0xff]
    %v30 = vld [vmem:[%s1 + $0x88] sm:$0xff]
    %v31 = vld [vmem:[%s1 + $0x90] sm:$0xff]
    %v32 = vld [vmem:[%s1 + $0x98] sm:$0x1]
    %v33 = vlaneseq
    %v34 = vshrl.u32 %v33, 7
    %v35 = vsub.s32 0, %v34
    %v36 = vrot.slane %v14, %v35
    %vm37 = vcmask 64512
    %v39 = vsel %vm37, %v12, 0
    %41 = vmatprep.subr.mxu0 0.0
    %42 = vmatpush1.msra.mxu0 %v13
    %43 = vmatprep.subr.mxu0 0.0
    %44 = vmatpush1.msra.mxu0 0.0
    %45 = vmatprep.subr.mxu0 0.0
    %46 = vmatpush1.msra.mxu0 0.0
    %47 = vmatprep.subr.mxu0 0.0
    %48 = vmatpush1.msra.mxu0 0.0
    %49 = vmatprep.subr.mxu0 0.0
    %50 = vmatpush1.msra.mxu0 0.0
    %51 = vmatprep.subr.mxu0 0.0
    %52 = vmatpush1.msra.mxu0 0.0
    %53 = vmatprep.subr.mxu0 0.0
    %54 = vmatpush1.msra.mxu0 0.0
    %55 = vmatprep.subr.mxu0 0.0
    %56 = vmatpush1.msra.mxu0 0.0
    %57 = vmatprep.subr.mxu0 0.0
    %58 = vmatpush1.msra.mxu0 0.0
    %59 = vmatprep.subr.mxu0 0.0
    %60 = vmatpush1.msra.mxu0 0.0
    %61 = vmatprep.subr.mxu0 0.0
    %62 = vmatpush1.msra.mxu0 0.0
    %63 = vmatprep.subr.mxu0 0.0
    %64 = vmatpush1.msra.mxu0 0.0
    %65 = vmatprep.subr.mxu0 0.0
    %66 = vmatpush1.msra.mxu0 0.0
    %67 = vmatprep.subr.mxu0 0.0
    %68 = vmatpush1.msra.mxu0 0.0
    %69 = vmatprep.subr.mxu0 0.0
    %70 = vmatpush1.msra.mxu0 0.0
    %71 = vmatprep.subr.mxu0 0.0
    %72 = vmatpush1.msra.mxu0 0.0
    %73 = vmatprep.subr.mxu0 0.0
    %74 = vmatpush1.msra.mxu0 0.0
    %75 = vmatprep.subr.mxu0 0.0
    %76 = vmatpush1.msra.mxu0 0.0
    %77 = vmatprep.subr.mxu0 0.0
    %78 = vmatpush1.msra.mxu0 0.0
    %79 = vmatprep.subr.mxu0 0.0
    %80 = vmatpush1.msra.mxu0 0.0
    %81 = vmatprep.subr.mxu0 0.0
    %82 = vmatpush1.msra.mxu0 0.0
    %83 = vmatprep.subr.mxu0 0.0
    %84 = vmatpush1.msra.mxu0 0.0
    %85 = vmatprep.subr.mxu0 0.0
    %86 = vmatpush1.msra.mxu0 0.0
    %87 = vmatprep.subr.mxu0 0.0
    %88 = vmatpush1.msra.mxu0 0.0
    %89 = vmatprep.subr.mxu0 0.0
    %90 = vmatpush1.msra.mxu0 0.0
    %91 = vmatprep.subr.mxu0 0.0
    %92 = vmatpush1.msra.mxu0 0.0
    %93 = vmatprep.subr.mxu0 0.0
    %94 = vmatpush1.msra.mxu0 0.0
    %95 = vmatprep.subr.mxu0 0.0
    %96 = vmatpush1.msra.mxu0 0.0
    %97 = vmatprep.subr.mxu0 0.0
    %98 = vmatpush1.msra.mxu0 0.0
    %99 = vmatprep.subr.mxu0 0.0
    %100 = vmatpush1.msra.mxu0 0.0
    %101 = vmatprep.subr.mxu0 0.0
    %102 = vmatpush1.msra.mxu0 0.0
    %103 = vmatprep.subr.mxu0 0.0
    %104 = vmatpush1.msra.mxu0 0.0
    %105 = vmatprep.mubr.f32.mxu0 0.0
    %106 = vmatmul.mubr.f32.gmra.mrb[0].mxu0 %v39
    %v107 = vpop.f32.mrb[0].mxu0
    %v108 = vadd.f32 %v36, %v107
    %v109 = vpop.f32.mrb[0].mxu0
    %110 = vdwg.mxu0
    %v111 = vmax.f32 %v108, 0.0
    %v112 = vlaneseq
    %v113 = vshrl.u32 %v112, 7
    %v114 = vsub.s32 0, %v113
    %v115 = vrot.slane %v23, %v114
    %vm116 = vcmask 523264
    %v118 = vsel %vm116, %v111, 0
    %120 = vmatprep.subr.mxu0 0.0
    %121 = vmatpush1.msra.mxu0 %v15
    %122 = vmatprep.subr.mxu0 0.0
    %123 = vmatpush1.msra.mxu0 %v16
    %124 = vmatprep.subr.mxu0 0.0
    %125 = vmatpush1.msra.mxu0 %v17
    %126 = vmatprep.subr.mxu0 0.0
    %127 = vmatpush1.msra.mxu0 %v18
    %128 = vmatprep.subr.mxu0 0.0
    %129 = vmatpush1.msra.mxu0 %v19
    %130 = vmatprep.subr.mxu0 0.0
    %131 = vmatpush1.msra.mxu0 %v20
    %132 = vmatprep.subr.mxu0 0.0
    %133 = vmatpush1.msra.mxu0 %v21
    %134 = vmatprep.subr.mxu0 0.0
    %135 = vmatpush1.msra.mxu0 %v22
    %136 = vmatprep.subr.mxu0 0.0
    %137 = vmatpush1.msra.mxu0 0.0
    %138 = vmatprep.subr.mxu0 0.0
    %139 = vmatpush1.msra.mxu0 0.0
    %140 = vmatprep.subr.mxu0 0.0
    %141 = vmatpush1.msra.mxu0 0.0
    %142 = vmatprep.subr.mxu0 0.0
    %143 = vmatpush1.msra.mxu0 0.0
    %144 = vmatprep.subr.mxu0 0.0
    %145 = vmatpush1.msra.mxu0 0.0
    %146 = vmatprep.subr.mxu0 0.0
    %147 = vmatpush1.msra.mxu0 0.0
    %148 = vmatprep.subr.mxu0 0.0
    %149 = vmatpush1.msra.mxu0 0.0
    %150 = vmatprep.subr.mxu0 0.0
    %151 = vmatpush1.msra.mxu0 0.0
    %152 = vmatprep.subr.mxu0 0.0
    %153 = vmatpush1.msra.mxu0 0.0
    %154 = vmatprep.subr.mxu0 0.0
    %155 = vmatpush1.msra.mxu0 0.0
    %156 = vmatprep.subr.mxu0 0.0
    %157 = vmatpush1.msra.mxu0 0.0
    %158 = vmatprep.subr.mxu0 0.0
    %159 = vmatpush1.msra.mxu0 0.0
    %160 = vmatprep.subr.mxu0 0.0
    %161 = vmatpush1.msra.mxu0 0.0
    %162 = vmatprep.subr.mxu0 0.0
    %163 = vmatpush1.msra.mxu0 0.0
    %164 = vmatprep.subr.mxu0 0.0
    %165 = vmatpush1.msra.mxu0 0.0
    %166 = vmatprep.subr.mxu0 0.0
    %167 = vmatpush1.msra.mxu0 0.0
    %168 = vmatprep.subr.mxu0 0.0
    %169 = vmatpush1.msra.mxu0 0.0
    %170 = vmatprep.subr.mxu0 0.0
    %171 = vmatpush1.msra.mxu0 0.0
    %172 = vmatprep.subr.mxu0 0.0
    %173 = vmatpush1.msra.mxu0 0.0
    %174 = vmatprep.subr.mxu0 0.0
    %175 = vmatpush1.msra.mxu0 0.0
    %176 = vmatprep.subr.mxu0 0.0
    %177 = vmatpush1.msra.mxu0 0.0
    %178 = vmatprep.subr.mxu0 0.0
    %179 = vmatpush1.msra.mxu0 0.0
    %180 = vmatprep.subr.mxu0 0.0
    %181 = vmatpush1.msra.mxu0 0.0
    %182 = vmatprep.subr.mxu0 0.0
    %183 = vmatpush1.msra.mxu0 0.0
    %184 = vmatprep.mubr.f32.mxu0 0.0
    %185 = vmatmul.mubr.f32.gmra.mrb[0].mxu0 %v118
    %v186 = vpop.f32.mrb[0].mxu0
    %v187 = vadd.f32 %v115, %v186
    %v188 = vpop.f32.mrb[0].mxu0
    %189 = vdwg.mxu0
    %v190 = vmax.f32 %v187, 0.0
    %v191 = vlaneseq
    %v192 = vshrl.u32 %v191, 7
    %v193 = vsub.s32 0, %v192
    %v194 = vrot.slane %v32, %v193
    %v196 = vsel %vm116, %v190, 0
    %198 = vmatprep.subr.mxu0 0.0
    %199 = vmatpush1.msra.mxu0 %v24
    %200 = vmatprep.subr.mxu0 0.0
    %201 = vmatpush1.msra.mxu0 %v25
    %202 = vmatprep.subr.mxu0 0.0
    %203 = vmatpush1.msra.mxu0 %v26
    %204 = vmatprep.subr.mxu0 0.0
    %205 = vmatpush1.msra.mxu0 %v27
    %206 = vmatprep.subr.mxu0 0.0
    %207 = vmatpush1.msra.mxu0 %v28
    %208 = vmatprep.subr.mxu0 0.0
    %209 = vmatpush1.msra.mxu0 %v29
    %210 = vmatprep.subr.mxu0 0.0
    %211 = vmatpush1.msra.mxu0 %v30
    %212 = vmatprep.subr.mxu0 0.0
    %213 = vmatpush1.msra.mxu0 %v31
    %214 = vmatprep.subr.mxu0 0.0
    %215 = vmatpush1.msra.mxu0 0.0
    %216 = vmatprep.subr.mxu0 0.0
    %217 = vmatpush1.msra.mxu0 0.0
    %218 = vmatprep.subr.mxu0 0.0
    %219 = vmatpush1.msra.mxu0 0.0
    %220 = vmatprep.subr.mxu0 0.0
    %221 = vmatpush1.msra.mxu0 0.0
    %222 = vmatprep.subr.mxu0 0.0
    %223 = vmatpush1.msra.mxu0 0.0
    %224 = vmatprep.subr.mxu0 0.0
    %225 = vmatpush1.msra.mxu0 0.0
    %226 = vmatprep.subr.mxu0 0.0
    %227 = vmatpush1.msra.mxu0 0.0
    %228 = vmatprep.subr.mxu0 0.0
    %229 = vmatpush1.msra.mxu0 0.0
    %230 = vmatprep.subr.mxu0 0.0
    %231 = vmatpush1.msra.mxu0 0.0
    %232 = vmatprep.subr.mxu0 0.0
    %233 = vmatpush1.msra.mxu0 0.0
    %234 = vmatprep.subr.mxu0 0.0
    %235 = vmatpush1.msra.mxu0 0.0
    %236 = vmatprep.subr.mxu0 0.0
    %237 = vmatpush1.msra.mxu0 0.0
    %238 = vmatprep.subr.mxu0 0.0
    %239 = vmatpush1.msra.mxu0 0.0
    %240 = vmatprep.subr.mxu0 0.0
    %241 = vmatpush1.msra.mxu0 0.0
    %242 = vmatprep.subr.mxu0 0.0
    %243 = vmatpush1.msra.mxu0 0.0
    %244 = vmatprep.subr.mxu0 0.0
    %245 = vmatpush1.msra.mxu0 0.0
    %246 = vmatprep.subr.mxu0 0.0
    %247 = vmatpush1.msra.mxu0 0.0
    %248 = vmatprep.subr.mxu0 0.0
    %249 = vmatpush1.msra.mxu0 0.0
    %250 = vmatprep.subr.mxu0 0.0
    %251 = vmatpush1.msra.mxu0 0.0
    %252 = vmatprep.subr.mxu0 0.0
    %253 = vmatpush1.msra.mxu0 0.0
    %254 = vmatprep.subr.mxu0 0.0
    %255 = vmatpush1.msra.mxu0 0.0
    %256 = vmatprep.subr.mxu0 0.0
    %257 = vmatpush1.msra.mxu0 0.0
    %258 = vmatprep.subr.mxu0 0.0
    %259 = vmatpush1.msra.mxu0 0.0
    %260 = vmatprep.subr.mxu0 0.0
    %261 = vmatpush1.msra.mxu0 0.0
    %262 = vmatprep.mubr.f32.mxu0 0.0
    %263 = vmatmul.mubr.f32.gmra.mrb[0].mxu0 %v196
    %v264 = vpop.f32.mrb[0].mxu0
    %v265 = vadd.f32 %v194, %v264
    %v266 = vpop.f32.mrb[0].mxu0
    %267 = vdwg.mxu0
    %v268 = vsub.f32 %v12, %v265
    %v269 = vmul.f32 %v265, 1.442695
    %v270 = vpow.pop %v269
    %272 = vrot.lane.b32.xlu0 %v270, 120
    %v273 = vpop.permute.xlu0 %272
    %v275 = vrcp.pop %v273
    %v276 = vmul.f32 %v268, %v275
    %278 = vrot.lane.b32.xlu0 %v265, 8
    %v279 = vpop.permute.xlu0 %278
    %v281 = vsel %vm37, %v276, %v279
    %vm282 = vcmask 130048
    %v283 = vsel %vm282, %v281, %v279
    %vm284 = vcmask 195584
    %v285 = vsel %vm284, %v283, 0.0
    %286 = vst [vmem:[#allocation2] sm:$0xff] %v285
    // Predicated region
    $region10: #{tpu_custom_call.1} parent=1 // pred_check
      _
    $region11: #{tpu_custom_call.1} parent=1 // pred_check_branch
      %288 = sbr.rel (0) target = $region13
    $region12: #{tpu_custom_call.1} parent=1 // pred_region
      %s290 = ssub.s32 128, 128
      %291 = vsyncadd [#allocation3], %s290
      %s293 = sshll.u32 [#allocation2], 4
      %s294 = int_to_ptr.vmem [resolvable:$true] %s293
      %296 = dma.vmem_to_hbm [thread:$0]  %s294, 128, %s2, [#allocation3]
    $region13: #{tpu_custom_call.1} parent=1 // pred_fallthru
      _
    // Predicated region
    $region14: #{tpu_custom_call.1} parent=1 // pred_check
      _
    $region15: #{tpu_custom_call.1} parent=1 // pred_check_branch
      %298 = sbr.rel (0) target = $region17
    $region16: #{tpu_custom_call.1} parent=1 // pred_region
      %299 = dma.done [#allocation3], 128
    $region17: #{tpu_custom_call.1} parent=1 // pred_fallthru
      _
    %300 = vsyncpa [#allocation3], 1

</llo_original>
